<compile_context>
chip_gen: v7x
topology: tpu7x:2x2x1
jax: 0.10.0
libtpu: 0.0.40
codegen_flags: <defaults>
</compile_context>

<pallas_src>
import math

import jax
import jax.numpy as jnp
from jax.experimental import pallas as pl
from jax.experimental.pallas import tpu as pltpu


def build_pe_table(d_model: int, max_len: int = 1000) -> jnp.ndarray:
    """Deterministic sinusoidal table, shape (max_len, 1, d_model).

    Mirrors the torch __init__ math exactly (parameter setup, not hot path).
    """
    position = jnp.arange(0, max_len, dtype=jnp.float32)[:, None]            # (max_len, 1)
    div_term = jnp.exp(
        jnp.arange(0, d_model, 2, dtype=jnp.float32) * -(math.log(10000.0) / d_model)
    )                                                                         # (d_model//2,)
    pe = jnp.zeros((max_len, d_model), dtype=jnp.float32)
    pe = pe.at[:, 0::2].set(jnp.sin(position * div_term))
    pe = pe.at[:, 1::2].set(jnp.cos(position * div_term))
    # unsqueeze(0).transpose(0, 1) -> (max_len, 1, d_model)
    return pe[:, None, :]


def _pe_add_kernel(x_ref, pe_ref, o_ref):
    # Pure VPU elementwise add on a lane-dense (tile_s, B*D) tile.
    o_ref[...] = (x_ref[...] + pe_ref[...]).astype(o_ref.dtype)


def _choose_tile_rows(n_rows: int, row_bytes: int, target_bytes: int = 2 << 20) -> int:
    """Pick a tile of ~2 MiB (multiple of 8 rows).

    With double-buffered x-in + out + pe the VMEM footprint is ~6x the tile,
    which fits the scoped-VMEM default on all of v5e / v6e / v7x while being
    large enough (>=512 rows for typical widths) to sit near HBM roofline.
    """
    rows = max(8, (target_bytes // max(row_bytes, 1)) // 8 * 8)
    if rows >= n_rows:
        return n_rows  # full extent — always a legal block shape
    return int(rows)


def positional_encoding_forward(
    x: jnp.ndarray,
    pe_full: jnp.ndarray,
    *,
    force_pallas: bool = False,
    min_bytes_for_pallas: int = 1 << 20,
) -> jnp.ndarray:
    """x: (S, B, D). Returns x + pe[:S] (broadcast over batch), like the torch forward."""
    S, B, D = x.shape
    assert pe_full.shape[0] >= S and pe_full.shape[-1] == D

    # Tiny tensors: a fused XLA broadcast-add is already at roofline; the
    # pallas_call launch / per-grid-step overhead would dominate.
    if not force_pallas and x.size * x.dtype.itemsize < min_bytes_for_pallas:
        return x + pe_full[:S].astype(x.dtype)

    # Lane-dense layout: collapse (B, D) onto the lane axis.  x is seq-major
    # contiguous so this reshape is a free view; pe is materialized once as a
    # (max_len, B*D) table (broadcast over batch) so the kernel is a plain 2D
    # elementwise add with no size-1 middle dim and unmasked stores.
    BD = B * D
    x2 = x.reshape(S, BD)
    pe2 = jnp.broadcast_to(pe_full, (pe_full.shape[0], B, D)).reshape(-1, BD)
    pe2 = pe2.astype(jnp.float32)

    tile_s = _choose_tile_rows(S, BD * x.dtype.itemsize)
    grid = (pl.cdiv(S, tile_s),)

    itemsize = x.dtype.itemsize
    cost = pl.CostEstimate(
        flops=S * BD,
        transcendentals=0,
        bytes_accessed=2 * S * BD * itemsize + S * BD * pe2.dtype.itemsize,
    )

    out2 = pl.pallas_call(
        _pe_add_kernel,
        out_shape=jax.ShapeDtypeStruct((S, BD), x.dtype),
        grid=grid,
        in_specs=[
            pl.BlockSpec((tile_s, BD), lambda i: (i, 0)),
            # Index straight into the full (max_len, B*D) table — no wrapper slice.
            pl.BlockSpec((tile_s, BD), lambda i: (i, 0)),
        ],
        out_specs=pl.BlockSpec((tile_s, BD), lambda i: (i, 0)),
        compiler_params=pltpu.CompilerParams(
            # Bandwidth-bound elementwise op: let v7x's two TensorCores split
            # the S axis; no-op on single-TC v5e/v6e.
            dimension_semantics=("parallel",),
        ),
        cost_estimate=cost,
    )(x2, pe2)

    return out2.reshape(S, B, D)


if __name__ == "__main__":
    d_model = 32
    max_len = 1000
    seq_len = 8
    batch = 2

    key = jax.random.PRNGKey(0)
    x = jax.random.normal(key, (seq_len, batch, d_model), dtype=jnp.float32)

    pe_full = build_pe_table(d_model, max_len)

    # Force the Pallas path so the kernel itself is exercised at demo size.
    out = positional_encoding_forward(x, pe_full, force_pallas=True)
    out = jax.block_until_ready(out)

    # Reference check against plain JAX (same math as the torch forward).
    ref = x + pe_full[:seq_len]
    assert out.shape == (seq_len, batch, d_model)
    assert jnp.allclose(out, ref, atol=1e-6), "mismatch vs reference"

    print("KERNEL_OK")
</pallas_src>

<mosaic_0001>
module attributes {stable_mosaic.version = 11 : i64} {
  func.func @_pe_add_kernel(%arg0: i32, %arg1: memref<8x64xf32, #tpu.memory_space<vmem>>, %arg2: memref<8x64xf32, #tpu.memory_space<vmem>>, %arg3: memref<8x64xf32, #tpu.memory_space<vmem>>) attributes {dimension_semantics = [#tpu.dimension_semantics<parallel>], iteration_bounds = array<i64: 1>, scalar_prefetch = 0 : i64, scratch_operands = 0 : i64, tpu.core_type = #tpu.core_type<tc>, window_params = [{transform_indices = @transform_0, window_bounds = array<i64: 8, 64>}, {transform_indices = @transform_1, window_bounds = array<i64: 8, 64>}, {transform_indices = @transform_2, window_bounds = array<i64: 8, 64>}]} {
    %c0 = arith.constant 0 : index
    %c0_0 = arith.constant 0 : index
    %0 = vector.load %arg1[%c0, %c0_0] : memref<8x64xf32, #tpu.memory_space<vmem>>, vector<8x64xf32>
    %c0_1 = arith.constant 0 : index
    %c0_2 = arith.constant 0 : index
    %1 = vector.load %arg2[%c0_1, %c0_2] : memref<8x64xf32, #tpu.memory_space<vmem>>, vector<8x64xf32>
    %2 = arith.addf %0, %1 : vector<8x64xf32>
    %c0_3 = arith.constant 0 : index
    %c0_4 = arith.constant 0 : index
    %3 = vector.load %arg3[%c0_3, %c0_4] : memref<8x64xf32, #tpu.memory_space<vmem>>, vector<8x64xf32>
    tpu.vector_store %arg3[%c0_3, %c0_4], %2 {strides = array<i32>} : memref<8x64xf32, #tpu.memory_space<vmem>>, vector<8x64xf32>,
    return
  }
  func.func @transform_0(%arg0: i32) -> (i32, i32) {
    %c0_i32 = arith.constant 0 : i32
    %c0_i32_0 = arith.constant 0 : i32
    return %arg0, %c0_i32 : i32, i32
  }
  func.func @transform_1(%arg0: i32) -> (i32, i32) {
    %c0_i32 = arith.constant 0 : i32
    %c0_i32_0 = arith.constant 0 : i32
    return %arg0, %c0_i32 : i32, i32
  }
  func.func @transform_2(%arg0: i32) -> (i32, i32) {
    %c0_i32 = arith.constant 0 : i32
    %c0_i32_0 = arith.constant 0 : i32
    return %arg0, %c0_i32 : i32, i32
  }
}

</mosaic_0001>

<llo_original>
// kernel: tpu_custom_call.1
$region0: #{tpu_custom_call.1}
  #allocation0 [shape = 'u32[]', space=smem, size = 0x4, offset = 0x4, fixed_abs, tag = 'smem constant byte address 0x4 - core index']
  #allocation1 [shape = 'u32[144,128]{1,0:T(1,128)}', space=vmem, size = 0x12000, scoped, tag = 'internal scratch']
  %s0 = inlined_call_operand.vmem [shape: f32[8,64], index: 0, kind: input, shape index: {}]
  %s1 = inlined_call_operand.vmem [shape: f32[1000,64], index: 1, kind: input, shape index: {}]
  %s2 = inlined_call_operand.hbm [shape: f32[8,64], index: 2, kind: output, shape index: {}]
  %s3 = sld [smem:[#allocation0]]
  $region18: #{tpu_custom_call.1} parent=0
    _
  %s5 = ssub.s32 1, %s3
  %s6 = scalar_select 0, %s5, %s3
  $region1: #{tpu_custom_call.1} parent=0
    #allocation2 [shape = 'u8[4096]{0}', space=vmem, size = 0x1000, scoped, tag = 'output window, operand 0, single buffered']
    #allocation3 [shape = 's32[1]{0}', space=sflag, size = 0x4, scoped, tag = 'scoped memory for tpu_custom_call.1']
    %7 = vsyncpa [#allocation3], 0
    // Predicated region
    $region2: #{tpu_custom_call.1} parent=1 // pred_check
      _
    $region3: #{tpu_custom_call.1} parent=1 // pred_check_branch
      %9 = sbr.rel (0) target = $region5
    $region4: #{tpu_custom_call.1} parent=1 // pred_region
      _
    $region5: #{tpu_custom_call.1} parent=1 // pred_fallthru
      _
    // Predicated region
    $region6: #{tpu_custom_call.1} parent=1 // pred_check
      _
    $region7: #{tpu_custom_call.1} parent=1 // pred_check_branch
      %11 = sbr.rel (0) target = $region9
    $region8: #{tpu_custom_call.1} parent=1 // pred_region
      _
    $region9: #{tpu_custom_call.1} parent=1 // pred_fallthru
      _
    %v12 = vld [vmem:[%s0] sm:$0xff]
    %v13 = vld [vmem:[%s1] sm:$0xff]
    %v14 = vadd.f32 %v12, %v13
    %vm15 = vcmask 523264
    %16 = vst.msk [vmem:[#allocation2] sm:$0xff] %vm15, %v14
    // Predicated region
    $region10: #{tpu_custom_call.1} parent=1 // pred_check
      _
    $region11: #{tpu_custom_call.1} parent=1 // pred_check_branch
      %18 = sbr.rel (0) target = $region13
    $region12: #{tpu_custom_call.1} parent=1 // pred_region
      %s20 = ssub.s32 128, 128
      %21 = vsyncadd [#allocation3], %s20
      %s23 = sshll.u32 [#allocation2], 4
      %s24 = int_to_ptr.vmem [resolvable:$true] %s23
      %26 = dma.vmem_to_hbm [thread:$0]  %s24, 128, %s2, [#allocation3]
    $region13: #{tpu_custom_call.1} parent=1 // pred_fallthru
      _
    // Predicated region
    $region14: #{tpu_custom_call.1} parent=1 // pred_check
      _
    $region15: #{tpu_custom_call.1} parent=1 // pred_check_branch
      %28 = sbr.rel (0) target = $region17
    $region16: #{tpu_custom_call.1} parent=1 // pred_region
      %29 = dma.done [#allocation3], 128
    $region17: #{tpu_custom_call.1} parent=1 // pred_fallthru
      _
    %30 = vsyncpa [#allocation3], 1

</llo_original>
